<compile_context>
chip_gen: v6e
topology: v6e:2x2x1
jax: 0.10.0
libtpu: 0.0.40
codegen_flags: <defaults>
</compile_context>

<pallas_src>
import jax
import jax.numpy as jnp
from jax.experimental import pallas as pl
from jax.experimental.pallas import tpu as pltpu


def _round_up(a: int, b: int) -> int:
    return (a + b - 1) // b * b


def _is_v7() -> bool:
    try:
        return "v7" in jax.devices()[0].device_kind.lower()
    except Exception:
        return False


def _vmem_limit_bytes() -> int:
    # v7x has 64 MiB physical VMEM per TensorCore -> stay at 48 MiB scoped;
    # v5e/v6e have 128 MiB -> 64 MiB scoped leaves room for bigger tiles.
    if _is_v7():
        return 48 * 1024 * 1024
    return 64 * 1024 * 1024


def gin_kernel(tbl_ref, cnt_ref, eps_ref, adj_ref, xs_ref, xd_ref,
               w1_ref, b1_ref, w2_ref, b2_ref, o_ref, acc_ref):
    """One (dst_tile i, reduction step k) grid step.

    tbl_ref/cnt_ref: scalar-prefetch SMEM block-sparsity metadata.
    adj_ref: [TM, TK] bf16 adjacency tile (edge counts), xs_ref: [TK, F] bf16
    source features, xd_ref: [TM, F] f32 dst features (epilogue only),
    w1/w2 bf16, b1/b2 f32.  acc_ref: [TM, F] f32 accumulator, resident across
    the reduction axis.
    """
    i = pl.program_id(0)
    k = pl.program_id(1)

    @pl.when(k == 0)
    def _init():
        acc_ref[...] = jnp.zeros_like(acc_ref)

    # GIN "add" aggregation as a bf16 x bf16 -> f32 MXU matmul, executed only
    # for this dst tile's non-empty src tiles (block-sparse skip).  Skipped
    # steps keep the clamped (repeated) block index, so their DMAs are deduped.
    @pl.when(k < cnt_ref[i])
    def _accumulate():
        acc_ref[...] += jnp.dot(adj_ref[...], xs_ref[...],
                                preferred_element_type=jnp.float32)

    # Fused epilogue, once per dst tile (last reduction step): (1+eps)*x + agg
    # formed in place on the accumulator, then the 2-layer MLP in bf16 with
    # f32 accumulation.
    @pl.when(k == pl.num_programs(1) - 1)
    def _epilogue():
        scale = 1.0 + eps_ref[0]
        acc_ref[...] += scale * xd_ref[...]
        h = acc_ref[...].astype(jnp.bfloat16)
        h1 = jnp.dot(h, w1_ref[...],
                     preferred_element_type=jnp.float32) + b1_ref[...]
        h1 = jnp.maximum(h1, 0.0).astype(jnp.bfloat16)
        out = jnp.dot(h1, w2_ref[...],
                      preferred_element_type=jnp.float32) + b2_ref[...]
        o_ref[...] = out.astype(o_ref.dtype)


def prepare_graph(edge_index, num_nodes, *, tm=None, tk=None):
    """Build the padded dense adjacency and block-sparsity tables.

    Call ONCE per graph topology and reuse across forward passes: the O(N^2)
    scatter below is the wrapper-side bottleneck, not the kernel.
    """
    N = int(num_nodes)
    N128 = _round_up(max(N, 1), 128)

    if tm is None:
        tm = min(512, N128)
        # v7x has 2 TensorCores: keep >= 2 parallel dst tiles when possible.
        if _is_v7():
            while tm > 128 and N128 // tm < 2:
                tm //= 2
    if tk is None:
        tk = min(512 if _is_v7() else 1024, N128)

    Nd = _round_up(N, tm)   # padded dst count
    Ns = _round_up(N, tk)   # padded src count
    nI, nK = Nd // tm, Ns // tk

    src = edge_index[0]
    dst = edge_index[1]

    # bf16 adjacency: adj[dst, src] edge counts (exact in bf16 up to 256
    # parallel edges); agg = adj @ x is the "add" aggregation over sources.
    adj = jnp.zeros((Nd, Ns), jnp.bfloat16).at[dst, src].add(1.0)

    # Block-sparsity metadata: for each dst tile, the non-empty src tiles come
    # first (original order); padding steps repeat the last non-empty index so
    # the pipeline dedups their DMAs.
    blk_nz = adj.reshape(nI, tm, nK, tk).astype(jnp.float32).sum(axis=(1, 3)) > 0.0
    cnt = blk_nz.sum(axis=1).astype(jnp.int32)                       # (nI,)
    order = jnp.argsort((~blk_nz).astype(jnp.int32), axis=1).astype(jnp.int32)
    step = jnp.arange(nK, dtype=jnp.int32)[None, :]
    clamp = jnp.minimum(step, jnp.maximum(cnt[:, None] - 1, 0))
    tbl = jnp.take_along_axis(order, clamp, axis=1).reshape(-1)      # (nI*nK,)

    return dict(adj=adj, tbl=tbl, cnt=cnt, TM=tm, TK=tk,
                Nd=Nd, Ns=Ns, nI=nI, nK=nK)


def gin_conv(x, edge_index, edge_attr, params, graph=None):
    """Wrapper: pads/tiles operands (glue) and runs the fused kernel."""
    del edge_attr  # ignored by GINConv.forward, same as the PyTorch module
    N, nin = x.shape
    nout = params["w2"].shape[1]

    if graph is None:
        graph = prepare_graph(edge_index, N)
    TM, TK = graph["TM"], graph["TK"]
    Nd, Ns = graph["Nd"], graph["Ns"]
    nI, nK = graph["nI"], graph["nK"]
    adj, tbl, cnt = graph["adj"], graph["tbl"], graph["cnt"]

    # Lane-dense feature dims (hidden dim of the MLP == nin).
    F = _round_up(nin, 128)
    Fo = _round_up(nout, 128)

    xf = x.astype(jnp.float32)
    # Source-feature operand of the aggregation matmul: bf16, padded.
    xs = jnp.zeros((Ns, F), jnp.bfloat16).at[:N, :nin].set(xf.astype(jnp.bfloat16))
    # Dst-feature operand used only in the epilogue ((1+eps)*x): f32, padded.
    xd = jnp.zeros((Nd, F), jnp.float32).at[:N, :nin].set(xf)

    # bf16 weights (f32xf32 matmuls are MXU-emulated and slow, worst on v5e);
    # biases stay f32 and are added on the f32 accumulation results.
    w1 = jnp.zeros((F, F), jnp.bfloat16).at[:nin, :nin].set(
        params["w1"].astype(jnp.bfloat16))
    b1 = jnp.zeros((1, F), jnp.float32).at[:, :nin].set(
        params["b1"].reshape(1, nin))
    w2 = jnp.zeros((F, Fo), jnp.bfloat16).at[:nin, :nout].set(
        params["w2"].astype(jnp.bfloat16))
    b2 = jnp.zeros((1, Fo), jnp.float32).at[:, :nout].set(
        params["b2"].reshape(1, nout))

    eps = jnp.reshape(params["eps"], (1,)).astype(jnp.float32)

    resident = pl.Buffered(buffer_count=1)  # fetched once; no double-buffering

    grid_spec = pltpu.PrefetchScalarGridSpec(
        num_scalar_prefetch=2,   # tbl, cnt -> SMEM, visible to index_maps
        grid=(nI, nK),
        in_specs=[
            pl.BlockSpec(memory_space=pltpu.MemorySpace.SMEM),        # eps (1,)
            # Adjacency tile: column picked from the per-dst-tile nonzero list.
            pl.BlockSpec((TM, TK), lambda i, k, t, c: (i, t[i * nK + k])),
            # Source features for the same src tile.
            pl.BlockSpec((TK, F), lambda i, k, t, c: (t[i * nK + k], 0)),
            # Dst features (epilogue only).
            pl.BlockSpec((TM, F), lambda i, k, t, c: (i, 0)),
            # Resident MLP parameters, single-buffered.
            pl.BlockSpec((F, F), lambda i, k, t, c: (0, 0), pipeline_mode=resident),
            pl.BlockSpec((1, F), lambda i, k, t, c: (0, 0), pipeline_mode=resident),
            pl.BlockSpec((F, Fo), lambda i, k, t, c: (0, 0), pipeline_mode=resident),
            pl.BlockSpec((1, Fo), lambda i, k, t, c: (0, 0), pipeline_mode=resident),
        ],
        out_specs=pl.BlockSpec((TM, Fo), lambda i, k, t, c: (i, 0)),
        scratch_shapes=[pltpu.VMEM((TM, F), jnp.float32)],
    )

    # Static upper-bound cost (real aggregation work scales with nnz tiles).
    flops = 2 * Nd * Ns * F + 2 * Nd * F * F + 2 * Nd * F * Fo
    bytes_accessed = (
        Nd * Ns * 2                         # adjacency (bf16), read once (<=)
        + Ns * F * 2 * nI                   # src features re-read per dst tile
        + Nd * F * 4                        # dst features
        + (F * F + F * Fo) * 2 + (F + Fo) * 4
        + Nd * Fo * 4                       # output store
    )
    cost = pl.CostEstimate(flops=flops, transcendentals=0,
                           bytes_accessed=bytes_accessed)

    out = pl.pallas_call(
        gin_kernel,
        out_shape=jax.ShapeDtypeStruct((Nd, Fo), jnp.float32),
        grid_spec=grid_spec,
        compiler_params=pltpu.CompilerParams(
            dimension_semantics=("parallel", "arbitrary"),
            vmem_limit_bytes=_vmem_limit_bytes(),
        ),
        cost_estimate=cost,
    )(tbl, cnt, eps, adj, xs, xd, w1, b1, w2, b2)

    return out[:N, :nout]


def init_params(key, nin, nout):
    """Deterministic synthetic parameters matching the module's shapes."""
    k1, k2, k3, k4 = jax.random.split(key, 4)
    # MLP(nin, nout, nlayer=2, with_norm=False): hidden dim == nin
    w1 = jax.random.normal(k1, (nin, nin), jnp.float32) * 0.1
    b1 = jax.random.normal(k2, (1, nin), jnp.float32) * 0.1
    w2 = jax.random.normal(k3, (nin, nout), jnp.float32) * 0.1
    b2 = jax.random.normal(k4, (1, nout), jnp.float32) * 0.1
    eps = jnp.zeros((), jnp.float32)  # train_eps=True, initial value 0.0
    return {"w1": w1, "b1": b1, "w2": w2, "b2": b2, "eps": eps}


def reference(x, edge_index, params, *, match_kernel_precision=False):
    """Pure-JAX reference of the same forward pass.

    match_kernel_precision=True rounds the aggregation inputs and the MLP
    operands to bf16 (f32 accumulate), matching the kernel's MXU math.
    """
    src, dst = edge_index[0], edge_index[1]
    if match_kernel_precision:
        xs = x.astype(jnp.bfloat16).astype(jnp.float32)
    else:
        xs = x.astype(jnp.float32)
    agg = jnp.zeros_like(x).at[dst].add(xs[src])
    h = (1.0 + params["eps"]) * x + agg
    if match_kernel_precision:
        h1 = jnp.dot(h.astype(jnp.bfloat16), params["w1"].astype(jnp.bfloat16),
                     preferred_element_type=jnp.float32) + params["b1"]
        h1 = jnp.maximum(h1, 0.0).astype(jnp.bfloat16)
        return jnp.dot(h1, params["w2"].astype(jnp.bfloat16),
                       preferred_element_type=jnp.float32) + params["b2"]
    hp = jax.lax.Precision.HIGHEST
    h1 = jnp.maximum(jnp.dot(h, params["w1"], precision=hp) + params["b1"], 0.0)
    return jnp.dot(h1, params["w2"], precision=hp) + params["b2"]


def _check(out, x, edge_index, params):
    ref_match = reference(x, edge_index, params, match_kernel_precision=True)
    assert jnp.allclose(out, ref_match, atol=1e-2, rtol=1e-2)
    ref_f32 = reference(x, edge_index, params, match_kernel_precision=False)
    assert jnp.allclose(out, ref_f32, atol=5e-2, rtol=5e-2)


if __name__ == "__main__":
    key = jax.random.PRNGKey(0)
    k_x, k_e, k_p, k_a, k_x2, k_es, k_ed, k_p2 = jax.random.split(key, 8)

    # --- Test 1: small graph, single tile ------------------------------------
    N, E, nin, nout = 8, 16, 32, 32
    x = jax.random.normal(k_x, (N, nin), jnp.float32)
    edge_index = jax.random.randint(k_e, (2, E), 0, N, dtype=jnp.int32)
    edge_attr = jax.random.normal(k_a, (E, nin), jnp.float32)  # unused

    params = init_params(k_p, nin, nout)
    out = jax.block_until_ready(gin_conv(x, edge_index, edge_attr, params))
    assert out.shape == (N, nout)
    _check(out, x, edge_index, params)

    # --- Test 2: multi-tile graph exercising the block-sparse skip path ------
    N2, E2, nin2, nout2 = 300, 600, 64, 64
    x2 = jax.random.normal(k_x2, (N2, nin2), jnp.float32)
    src2 = jax.random.randint(k_es, (E2,), 0, 96, dtype=jnp.int32)    # src tile 0 only
    dst2 = jax.random.randint(k_ed, (E2,), 0, 200, dtype=jnp.int32)   # dst tiles 0,1
    edge_index2 = jnp.stack([src2, dst2])
    params2 = init_params(k_p2, nin2, nout2)

    graph2 = prepare_graph(edge_index2, N2, tm=128, tk=128)  # reusable per-graph metadata
    out2 = jax.block_until_ready(gin_conv(x2, edge_index2, None, params2, graph=graph2))
    assert out2.shape == (N2, nout2)
    _check(out2, x2, edge_index2, params2)

    print("KERNEL_OK")
</pallas_src>

<mosaic_0001>
module attributes {stable_mosaic.version = 11 : i64} {
  func.func @gin_kernel(%arg0: i32, %arg1: i32, %arg2: memref<1xi32, #tpu.memory_space<smem>>, %arg3: memref<1xi32, #tpu.memory_space<smem>>, %arg4: memref<1xf32, #tpu.memory_space<smem>>, %arg5: memref<128x128xbf16, #tpu.memory_space<vmem>>, %arg6: memref<128x128xbf16, #tpu.memory_space<vmem>>, %arg7: memref<128x128xf32, #tpu.memory_space<vmem>>, %arg8: memref<128x128xbf16, #tpu.memory_space<vmem>>, %arg9: memref<1x128xf32, #tpu.memory_space<vmem>>, %arg10: memref<128x128xbf16, #tpu.memory_space<vmem>>, %arg11: memref<1x128xf32, #tpu.memory_space<vmem>>, %arg12: memref<128x128xf32, #tpu.memory_space<vmem>>, %arg13: memref<128x128xf32, #tpu.memory_space<vmem>>) attributes {dimension_semantics = [#tpu.dimension_semantics<parallel>, #tpu.dimension_semantics<arbitrary>], iteration_bounds = array<i64: 1, 1>, scalar_prefetch = 2 : i64, scratch_operands = 1 : i64, tpu.core_type = #tpu.core_type<tc>, window_params = [{transform_indices = @transform_0, window_bounds = array<i64: 1>}, {transform_indices = @transform_1, window_bounds = array<i64: 128, 128>}, {transform_indices = @transform_2, window_bounds = array<i64: 128, 128>}, {transform_indices = @transform_3, window_bounds = array<i64: 128, 128>}, {pipeline_mode = #tpu.pipeline_mode<synchronous>, transform_indices = @transform_4, window_bounds = array<i64: 128, 128>}, {pipeline_mode = #tpu.pipeline_mode<synchronous>, transform_indices = @transform_5, window_bounds = array<i64: 1, 128>}, {pipeline_mode = #tpu.pipeline_mode<synchronous>, transform_indices = @transform_6, window_bounds = array<i64: 128, 128>}, {pipeline_mode = #tpu.pipeline_mode<synchronous>, transform_indices = @transform_7, window_bounds = array<i64: 1, 128>}, {transform_indices = @transform_8, window_bounds = array<i64: 128, 128>}]} {
    %c0_i32 = arith.constant 0 : i32
    %0 = arith.cmpi eq, %arg1, %c0_i32 : i32
    %1 = arith.extui %0 : i1 to i32
    %c0_i32_0 = arith.constant 0 : i32
    %2 = arith.cmpi ne, %1, %c0_i32_0 : i32
    scf.if %2 {
      %cst = arith.constant 0.000000e+00 : f32
      %11 = vector.broadcast %cst : f32 to vector<128x128xf32>
      %c0 = arith.constant 0 : index
      %c0_4 = arith.constant 0 : index
      %12 = vector.load %arg13[%c0, %c0_4] : memref<128x128xf32, #tpu.memory_space<vmem>>, vector<128x128xf32>
      tpu.vector_store %arg13[%c0, %c0_4], %11 {strides = array<i32>} : memref<128x128xf32, #tpu.memory_space<vmem>>, vector<128x128xf32>,
    } else {
    }
    %3 = arith.index_cast %arg0 : i32 to index
    %4 = memref.load %arg3[%3] : memref<1xi32, #tpu.memory_space<smem>>
    %5 = arith.cmpi slt, %arg1, %4 : i32
    %6 = arith.extui %5 : i1 to i32
    %c0_i32_1 = arith.constant 0 : i32
    %7 = arith.cmpi ne, %6, %c0_i32_1 : i32
    scf.if %7 {
      %c0 = arith.constant 0 : index
      %c0_4 = arith.constant 0 : index
      %11 = vector.load %arg13[%c0, %c0_4] : memref<128x128xf32, #tpu.memory_space<vmem>>, vector<128x128xf32>
      %c0_5 = arith.constant 0 : index
      %c0_6 = arith.constant 0 : index
      %12 = vector.load %arg5[%c0_5, %c0_6] : memref<128x128xbf16, #tpu.memory_space<vmem>>, vector<128x128xbf16>
      %c0_7 = arith.constant 0 : index
      %c0_8 = arith.constant 0 : index
      %13 = vector.load %arg6[%c0_7, %c0_8] : memref<128x128xbf16, #tpu.memory_space<vmem>>, vector<128x128xbf16>
      %cst = arith.constant dense<0.000000e+00> : vector<128x128xf32>
      %14 = tpu.matmul %12, %13, %cst {dimension_numbers = #tpu.dot_dimension_numbers<[1], [0], [0], [1], [0, 0, 1, 1], [], []>} : vector<128x128xbf16>, vector<128x128xbf16>, vector<128x128xf32> -> vector<128x128xf32>
      %15 = arith.addf %11, %14 : vector<128x128xf32>
      %c0_9 = arith.constant 0 : index
      %c0_10 = arith.constant 0 : index
      %16 = vector.load %arg13[%c0_9, %c0_10] : memref<128x128xf32, #tpu.memory_space<vmem>>, vector<128x128xf32>
      tpu.vector_store %arg13[%c0_9, %c0_10], %15 {strides = array<i32>} : memref<128x128xf32, #tpu.memory_space<vmem>>, vector<128x128xf32>,
    } else {
    }
    %c0_i32_2 = arith.constant 0 : i32
    %8 = arith.cmpi eq, %arg1, %c0_i32_2 : i32
    %9 = arith.extui %8 : i1 to i32
    %c0_i32_3 = arith.constant 0 : i32
    %10 = arith.cmpi ne, %9, %c0_i32_3 : i32
    scf.if %10 {
      %c0 = arith.constant 0 : index
      %11 = memref.load %arg4[%c0] : memref<1xf32, #tpu.memory_space<smem>>
      %cst = arith.constant 1.000000e+00 : f32
      %12 = arith.addf %cst, %11 : f32
      %c0_4 = arith.constant 0 : index
      %c0_5 = arith.constant 0 : index
      %13 = vector.load %arg13[%c0_4, %c0_5] : memref<128x128xf32, #tpu.memory_space<vmem>>, vector<128x128xf32>
      %c0_6 = arith.constant 0 : index
      %c0_7 = arith.constant 0 : index
      %14 = vector.load %arg7[%c0_6, %c0_7] : memref<128x128xf32, #tpu.memory_space<vmem>>, vector<128x128xf32>
      %15 = vector.broadcast %12 : f32 to vector<128x128xf32>
      %16 = arith.mulf %15, %14 : vector<128x128xf32>
      %17 = arith.addf %13, %16 : vector<128x128xf32>
      %c0_8 = arith.constant 0 : index
      %c0_9 = arith.constant 0 : index
      %18 = vector.load %arg13[%c0_8, %c0_9] : memref<128x128xf32, #tpu.memory_space<vmem>>, vector<128x128xf32>
      tpu.vector_store %arg13[%c0_8, %c0_9], %17 {strides = array<i32>} : memref<128x128xf32, #tpu.memory_space<vmem>>, vector<128x128xf32>,
      %c0_10 = arith.constant 0 : index
      %c0_11 = arith.constant 0 : index
      %19 = vector.load %arg13[%c0_10, %c0_11] : memref<128x128xf32, #tpu.memory_space<vmem>>, vector<128x128xf32>
      %20 = arith.truncf %19 : vector<128x128xf32> to vector<128x128xbf16>
      %c0_12 = arith.constant 0 : index
      %c0_13 = arith.constant 0 : index
      %21 = vector.load %arg8[%c0_12, %c0_13] : memref<128x128xbf16, #tpu.memory_space<vmem>>, vector<128x128xbf16>
      %cst_14 = arith.constant dense<0.000000e+00> : vector<128x128xf32>
      %22 = tpu.matmul %20, %21, %cst_14 {dimension_numbers = #tpu.dot_dimension_numbers<[1], [0], [0], [1], [0, 0, 1, 1], [], []>} : vector<128x128xbf16>, vector<128x128xbf16>, vector<128x128xf32> -> vector<128x128xf32>
      %c0_15 = arith.constant 0 : index
      %c0_16 = arith.constant 0 : index
      %23 = vector.load %arg9[%c0_15, %c0_16] : memref<1x128xf32, #tpu.memory_space<vmem>>, vector<1x128xf32>
      %24 = vector.broadcast %23 : vector<1x128xf32> to vector<128x128xf32>
      %25 = arith.addf %22, %24 : vector<128x128xf32>
      %cst_17 = arith.constant 0.000000e+00 : f32
      %26 = vector.broadcast %cst_17 : f32 to vector<128x128xf32>
      %27 = arith.maximumf %25, %26 : vector<128x128xf32>
      %28 = arith.truncf %27 : vector<128x128xf32> to vector<128x128xbf16>
      %c0_18 = arith.constant 0 : index
      %c0_19 = arith.constant 0 : index
      %29 = vector.load %arg10[%c0_18, %c0_19] : memref<128x128xbf16, #tpu.memory_space<vmem>>, vector<128x128xbf16>
      %cst_20 = arith.constant dense<0.000000e+00> : vector<128x128xf32>
      %30 = tpu.matmul %28, %29, %cst_20 {dimension_numbers = #tpu.dot_dimension_numbers<[1], [0], [0], [1], [0, 0, 1, 1], [], []>} : vector<128x128xbf16>, vector<128x128xbf16>, vector<128x128xf32> -> vector<128x128xf32>
      %c0_21 = arith.constant 0 : index
      %c0_22 = arith.constant 0 : index
      %31 = vector.load %arg11[%c0_21, %c0_22] : memref<1x128xf32, #tpu.memory_space<vmem>>, vector<1x128xf32>
      %32 = vector.broadcast %31 : vector<1x128xf32> to vector<128x128xf32>
      %33 = arith.addf %30, %32 : vector<128x128xf32>
      %c0_23 = arith.constant 0 : index
      %c0_24 = arith.constant 0 : index
      %34 = vector.load %arg12[%c0_23, %c0_24] : memref<128x128xf32, #tpu.memory_space<vmem>>, vector<128x128xf32>
      tpu.vector_store %arg12[%c0_23, %c0_24], %33 {strides = array<i32>} : memref<128x128xf32, #tpu.memory_space<vmem>>, vector<128x128xf32>,
    } else {
    }
    return
  }
  func.func @transform_0(%arg0: i32, %arg1: i32, %arg2: memref<1xi32, #tpu.memory_space<smem>>, %arg3: memref<1xi32, #tpu.memory_space<smem>>) -> i32 {
    %c0_i32 = arith.constant 0 : i32
    %c0_i32_0 = arith.constant 0 : i32
    return %c0_i32 : i32
  }
  func.func @transform_1(%arg0: i32, %arg1: i32, %arg2: memref<1xi32, #tpu.memory_space<smem>>, %arg3: memref<1xi32, #tpu.memory_space<smem>>) -> (i32, i32) {
    %c1_i32 = arith.constant 1 : i32
    %0 = arith.muli %arg0, %c1_i32 : i32
    %1 = arith.addi %0, %arg1 : i32
    %2 = arith.index_cast %1 : i32 to index
    %3 = memref.load %arg2[%2] : memref<1xi32, #tpu.memory_space<smem>>
    %c0_i32 = arith.constant 0 : i32
    return %arg0, %3 : i32, i32
  }
  func.func @transform_2(%arg0: i32, %arg1: i32, %arg2: memref<1xi32, #tpu.memory_space<smem>>, %arg3: memref<1xi32, #tpu.memory_space<smem>>) -> (i32, i32) {
    %c1_i32 = arith.constant 1 : i32
    %0 = arith.muli %arg0, %c1_i32 : i32
    %1 = arith.addi %0, %arg1 : i32
    %2 = arith.index_cast %1 : i32 to index
    %3 = memref.load %arg2[%2] : memref<1xi32, #tpu.memory_space<smem>>
    %c0_i32 = arith.constant 0 : i32
    %c0_i32_0 = arith.constant 0 : i32
    return %3, %c0_i32 : i32, i32
  }
  func.func @transform_3(%arg0: i32, %arg1: i32, %arg2: memref<1xi32, #tpu.memory_space<smem>>, %arg3: memref<1xi32, #tpu.memory_space<smem>>) -> (i32, i32) {
    %c0_i32 = arith.constant 0 : i32
    %c0_i32_0 = arith.constant 0 : i32
    return %arg0, %c0_i32 : i32, i32
  }
  func.func @transform_4(%arg0: i32, %arg1: i32, %arg2: memref<1xi32, #tpu.memory_space<smem>>, %arg3: memref<1xi32, #tpu.memory_space<smem>>) -> (i32, i32) {
    %c0_i32 = arith.constant 0 : i32
    %c0_i32_0 = arith.constant 0 : i32
    %c0_i32_1 = arith.constant 0 : i32
    return %c0_i32, %c0_i32_0 : i32, i32
  }
  func.func @transform_5(%arg0: i32, %arg1: i32, %arg2: memref<1xi32, #tpu.memory_space<smem>>, %arg3: memref<1xi32, #tpu.memory_space<smem>>) -> (i32, i32) {
    %c0_i32 = arith.constant 0 : i32
    %c0_i32_0 = arith.constant 0 : i32
    %c0_i32_1 = arith.constant 0 : i32
    return %c0_i32, %c0_i32_0 : i32, i32
  }
  func.func @transform_6(%arg0: i32, %arg1: i32, %arg2: memref<1xi32, #tpu.memory_space<smem>>, %arg3: memref<1xi32, #tpu.memory_space<smem>>) -> (i32, i32) {
    %c0_i32 = arith.constant 0 : i32
    %c0_i32_0 = arith.constant 0 : i32
    %c0_i32_1 = arith.constant 0 : i32
    return %c0_i32, %c0_i32_0 : i32, i32
  }
  func.func @transform_7(%arg0: i32, %arg1: i32, %arg2: memref<1xi32, #tpu.memory_space<smem>>, %arg3: memref<1xi32, #tpu.memory_space<smem>>) -> (i32, i32) {
    %c0_i32 = arith.constant 0 : i32
    %c0_i32_0 = arith.constant 0 : i32
    %c0_i32_1 = arith.constant 0 : i32
    return %c0_i32, %c0_i32_0 : i32, i32
  }
  func.func @transform_8(%arg0: i32, %arg1: i32, %arg2: memref<1xi32, #tpu.memory_space<smem>>, %arg3: memref<1xi32, #tpu.memory_space<smem>>) -> (i32, i32) {
    %c0_i32 = arith.constant 0 : i32
    %c0_i32_0 = arith.constant 0 : i32
    return %arg0, %c0_i32 : i32, i32
  }
}

</mosaic_0001>

<llo_original>
// kernel: tpu_custom_call.1
$region0: #{tpu_custom_call.1}
  #allocation0 [shape = 'u32[]', space=smem, size = 0x4, offset = 0x4, fixed_abs, tag = 'smem constant byte address 0x4 - core index']
  #allocation1 [shape = 'u32[144,128]{1,0:T(1,128)}', space=vmem, size = 0x12000, scoped, tag = 'internal scratch']
  #allocation2 [shape = 'f32[128,128]{1,0:T(8,128)}', space=vmem, size = 0x10000, scoped, tag = 'scratch operand']
  #allocation3 [shape = 's32[1]{0}', space=sflag, size = 0x4, scoped, tag = 'scoped memory for tpu_custom_call.1']
  #allocation4 [shape = 's32[1]{0:T(128)S(6)}', space=smem, size = 0x200, scoped, tag = 'prefetched SMEM operand 0']
  #allocation5 [shape = 's32[1]{0:T(128)S(6)}', space=smem, size = 0x200, scoped, tag = 'prefetched SMEM operand 1']
  #allocation6 [shape = 'f32[1]{0:T(128)S(6)}', space=smem, size = 0x200, scoped, tag = 'scoped memory for tpu_custom_call.1']
  %s0 = inlined_call_operand.<no memory space> [shape: s32[1], index: 0, kind: input, shape index: {}]
  %s1 = inlined_call_operand.<no memory space> [shape: s32[1], index: 1, kind: input, shape index: {}]
  %s2 = inlined_call_operand.<no memory space> [shape: f32[1], index: 2, kind: input, shape index: {}]
  %s3 = inlined_call_operand.hbm [shape: bf16[128,128], index: 3, kind: input, shape index: {}]
  %s4 = inlined_call_operand.hbm [shape: bf16[128,128], index: 4, kind: input, shape index: {}]
  %s5 = inlined_call_operand.hbm [shape: f32[128,128], index: 5, kind: input, shape index: {}]
  %s6 = inlined_call_operand.hbm [shape: bf16[128,128], index: 6, kind: input, shape index: {}]
  %s7 = inlined_call_operand.vmem [shape: f32[1,128], index: 7, kind: input, shape index: {}]
  %s8 = inlined_call_operand.hbm [shape: bf16[128,128], index: 8, kind: input, shape index: {}]
  %s9 = inlined_call_operand.vmem [shape: f32[1,128], index: 9, kind: input, shape index: {}]
  %s10 = inlined_call_operand.hbm [shape: f32[128,128], index: 10, kind: output, shape index: {}]
  %s11 = sld [smem:[#allocation0]]
  $region74: #{tpu_custom_call.1} parent=0
    _
  %s13 = ssub.s32 1, %s11
  %s14 = scalar_select 0, %s13, %s11
  %15 = sst [smem:[#allocation4]] %s0
  %16 = sst [smem:[#allocation5]] %s1
  %17 = sst [smem:[#allocation6]] %s2
  $region1: #{tpu_custom_call.1} parent=0
    #allocation7 [shape = 'u8[32768]{0}', space=vmem, size = 0x8000, scoped, tag = 'input window, operand 3, single buffered']
    #allocation8 [shape = 's32[1]{0}', space=sflag, size = 0x4, scoped, tag = 'scoped memory for tpu_custom_call.1']
    #allocation9 [shape = 's32[1]{0}', space=sflag, size = 0x4, scoped, tag = 'scoped memory for tpu_custom_call.1']
    #allocation10 [shape = 'u8[32768]{0}', space=vmem, size = 0x8000, scoped, tag = 'input window, operand 4, single buffered']
    #allocation11 [shape = 's32[1]{0}', space=sflag, size = 0x4, scoped, tag = 'scoped memory for tpu_custom_call.1']
    #allocation12 [shape = 'u8[65536]{0}', space=vmem, size = 0x10000, scoped, tag = 'input window, operand 5, single buffered']
    #allocation13 [shape = 'u8[32768]{0}', space=vmem, size = 0x8000, scoped, tag = 'input window, operand 6, single buffered']
    #allocation14 [shape = 's32[1]{0}', space=sflag, size = 0x4, scoped, tag = 'scoped memory for tpu_custom_call.1']
    #allocation15 [shape = 'u8[32768]{0}', space=vmem, size = 0x8000, scoped, tag = 'input window, operand 8, single buffered']
    #allocation16 [shape = 'u8[65536]{0}', space=vmem, size = 0x10000, scoped, tag = 'output window, operand 0, single buffered']
    %18 = vsyncpa [#allocation8], 0
    %19 = vsyncpa [#allocation11], 0
    %20 = vsyncpa [#allocation14], 0
    %21 = vsyncpa [#allocation9], 0
    // Predicated region
    $region2: #{tpu_custom_call.1} parent=1 // pred_check
      _
    $region3: #{tpu_custom_call.1} parent=1 // pred_check_branch
      %23 = sbr.rel (0) target = $region5
    $region4: #{tpu_custom_call.1} parent=1 // pred_region
      _
    $region5: #{tpu_custom_call.1} parent=1 // pred_fallthru
      _
    // Predicated region
    $region6: #{tpu_custom_call.1} parent=1 // pred_check
      _
    $region7: #{tpu_custom_call.1} parent=1 // pred_check_branch
      %25 = sbr.rel (0) target = $region9
    $region8: #{tpu_custom_call.1} parent=1 // pred_region
      %s26 = sadd.s32 0, 0
      %s27 = sld [smem:[#allocation4 + %s26]]
      %s29 = ssub.s32 1024, 1024
      %30 = vsyncadd [#allocation8], %s29
      %s31 = smul.addr %s27, 64
      %s32 = scalar_lea.hbm %s3, %s31
      %s33 = sshll.u32 [#allocation7], 4
      %s34 = int_to_ptr.vmem [resolvable:$true] %s33
      %39 = dma.hbm_to_vmem [thread:$0]  %s32, 1024, %s34, [#allocation8], 64, 64, 4
    $region9: #{tpu_custom_call.1} parent=1 // pred_fallthru
      _
    // Predicated region
    $region10: #{tpu_custom_call.1} parent=1 // pred_check
      _
    $region11: #{tpu_custom_call.1} parent=1 // pred_check_branch
      %41 = sbr.rel (0) target = $region13
    $region12: #{tpu_custom_call.1} parent=1 // pred_region
      %s42 = sadd.s32 0, 0
      %s43 = sld [smem:[#allocation4 + %s42]]
      %s44 = smul.u32 16, %s43
      %s46 = ssub.s32 1024, 1024
      %47 = vsyncadd [#allocation11], %s46
      %s48 = smul.addr %s44, 64
      %s49 = scalar_lea.hbm %s4, %s48
      %s50 = sshll.u32 [#allocation10], 4
      %s51 = int_to_ptr.vmem [resolvable:$true] %s50
      %56 = dma.hbm_to_vmem [thread:$0]  %s49, 1024, %s51, [#allocation11], 64, 64, 4
    $region13: #{tpu_custom_call.1} parent=1 // pred_fallthru
      _
    // Predicated region
    $region14: #{tpu_custom_call.1} parent=1 // pred_check
      _
    $region15: #{tpu_custom_call.1} parent=1 // pred_check_branch
      %58 = sbr.rel (0) target = $region17
    $region16: #{tpu_custom_call.1} parent=1 // pred_region
      %s60 = ssub.s32 2048, 2048
      %61 = vsyncadd [#allocation11], %s60
      %s62 = sshll.u32 [#allocation12], 4
      %s63 = int_to_ptr.vmem [resolvable:$true] %s62
      %68 = dma.hbm_to_vmem [thread:$0]  %s5, 2048, %s63, [#allocation11], 128, 128, 8
    $region17: #{tpu_custom_call.1} parent=1 // pred_fallthru
      _
    // Predicated region
    $region18: #{tpu_custom_call.1} parent=1 // pred_check
      _
    $region19: #{tpu_custom_call.1} parent=1 // pred_check_branch
      %70 = sbr.rel (0) target = $region21
    $region20: #{tpu_custom_call.1} parent=1 // pred_region
      %s72 = ssub.s32 1024, 1024
      %73 = vsyncadd [#allocation14], %s72
      %s74 = sshll.u32 [#allocation13], 4
      %s75 = int_to_ptr.vmem [resolvable:$true] %s74
      %80 = dma.hbm_to_vmem [thread:$0]  %s6, 1024, %s75, [#allocation14], 64, 64, 4
    $region21: #{tpu_custom_call.1} parent=1 // pred_fallthru
      _
    // Predicated region
    $region22: #{tpu_custom_call.1} parent=1 // pred_check
      _
    $region23: #{tpu_custom_call.1} parent=1 // pred_check_branch
      %82 = sbr.rel (0) target = $region25
    $region24: #{tpu_custom_call.1} parent=1 // pred_region
      _
    $region25: #{tpu_custom_call.1} parent=1 // pred_fallthru
      _
    // Predicated region
    $region26: #{tpu_custom_call.1} parent=1 // pred_check
      _
    $region27: #{tpu_custom_call.1} parent=1 // pred_check_branch
      %84 = sbr.rel (0) target = $region29
    $region28: #{tpu_custom_call.1} parent=1 // pred_region
      %s86 = ssub.s32 1024, 1024
      %87 = vsyncadd [#allocation14], %s86
      %s88 = sshll.u32 [#allocation15], 4
      %s89 = int_to_ptr.vmem [resolvable:$true] %s88
      %94 = dma.hbm_to_vmem [thread:$0]  %s8, 1024, %s89, [#allocation14], 64, 64, 4
    $region29: #{tpu_custom_call.1} parent=1 // pred_fallthru
      _
    // Predicated region
    $region30: #{tpu_custom_call.1} parent=1 // pred_check
      _
    $region31: #{tpu_custom_call.1} parent=1 // pred_check_branch
      %96 = sbr.rel (0) target = $region33
    $region32: #{tpu_custom_call.1} parent=1 // pred_region
      _
    $region33: #{tpu_custom_call.1} parent=1 // pred_fallthru
      _
    // Predicated region
    $region34: #{tpu_custom_call.1} parent=1 // pred_check
      _
    $region35: #{tpu_custom_call.1} parent=1 // pred_check_branch
      %98 = sbr.rel (0) target = $region37
    $region36: #{tpu_custom_call.1} parent=1 // pred_region
      %99 = dma.done [#allocation8], 1024
    $region37: #{tpu_custom_call.1} parent=1 // pred_fallthru
      _
    // Predicated region
    $region38: #{tpu_custom_call.1} parent=1 // pred_check
      _
    $region39: #{tpu_custom_call.1} parent=1 // pred_check_branch
      %101 = sbr.rel (0) target = $region41
    $region40: #{tpu_custom_call.1} parent=1 // pred_region
      %102 = dma.done [#allocation11], 1024
    $region41: #{tpu_custom_call.1} parent=1 // pred_fallthru
      _
    // Predicated region
    $region42: #{tpu_custom_call.1} parent=1 // pred_check
      _
    $region43: #{tpu_custom_call.1} parent=1 // pred_check_branch
      %104 = sbr.rel (0) target = $region45
    $region44: #{tpu_custom_call.1} parent=1 // pred_region
      %105 = dma.done [#allocation11], 2048
    $region45: #{tpu_custom_call.1} parent=1 // pred_fallthru
      _
    // Predicated region
    $region46: #{tpu_custom_call.1} parent=1 // pred_check
      _
    $region47: #{tpu_custom_call.1} parent=1 // pred_check_branch
      %107 = sbr.rel (0) target = $region49
    $region48: #{tpu_custom_call.1} parent=1 // pred_region
      %108 = dma.done [#allocation14], 1024
    $region49: #{tpu_custom_call.1} parent=1 // pred_fallthru
      _
    // Predicated region
    $region50: #{tpu_custom_call.1} parent=1 // pred_check
      _
    $region51: #{tpu_custom_call.1} parent=1 // pred_check_branch
      %110 = sbr.rel (0) target = $region53
    $region52: #{tpu_custom_call.1} parent=1 // pred_region
      %111 = dma.done [#allocation14], 1024
    $region53: #{tpu_custom_call.1} parent=1 // pred_fallthru
      _
    %s112 = sadd.s32 0, 0
    %s113 = sld [smem:[#allocation4 + %s112]]
    %s114 = sadd.s32 0, 0
    %s115 = sld [smem:[#allocation4 + %s114]]
    %s116 = smul.u32 16, %s115
    %p118 = scmp.eq.s32.totalorder 0, 0
    // Predicated region
    $region54: #{tpu_custom_call.1} parent=1 // pred_check
      %p119 = pneg %p118
    $region55: #{tpu_custom_call.1} parent=1 // pred_check_branch
      %121 = sbr.rel (%p119) target = $region57
    $region56: #{tpu_custom_call.1} parent=1 // pred_region
      %122 = vst [vmem:[#allocation2] sm:$0xff] 0.0
      %123 = vst [vmem:[#allocation2 + $0x8] sm:$0xff] 0.0
      %124 = vst [vmem:[#allocation2 + $0x10] sm:$0xff] 0.0
      %125 = vst [vmem:[#allocation2 + $0x18] sm:$0xff] 0.0
      %126 = vst [vmem:[#allocation2 + $0x20] sm:$0xff] 0.0
      %127 = vst [vmem:[#allocation2 + $0x28] sm:$0xff] 0.0
      %128 = vst [vmem:[#allocation2 + $0x30] sm:$0xff] 0.0
      %129 = vst [vmem:[#allocation2 + $0x38] sm:$0xff] 0.0
      %130 = vst [vmem:[#allocation2 + $0x40] sm:$0xff] 0.0
      %131 = vst [vmem:[#allocation2 + $0x48] sm:$0xff] 0.0
      %132 = vst [vmem:[#allocation2 + $0x50] sm:$0xff] 0.0
      %133 = vst [vmem:[#allocation2 + $0x58] sm:$0xff] 0.0
      %134 = vst [vmem:[#allocation2 + $0x60] sm:$0xff] 0.0
      %135 = vst [vmem:[#allocation2 + $0x68] sm:$0xff] 0.0
      %136 = vst [vmem:[#allocation2 + $0x70] sm:$0xff] 0.0
      %137 = vst [vmem:[#allocation2 + $0x78] sm:$0xff] 0.0
    $region57: #{tpu_custom_call.1} parent=1 // pred_fallthru
      _
    %s138 = sld [smem:[#allocation5]]
    %p139 = scmp.lt.s32.totalorder 0, %s138
    // Predicated region
    $region58: #{tpu_custom_call.1} parent=1 // pred_check
      %p140 = pneg %p139
    $region59: #{tpu_custom_call.1} parent=1 // pred_check_branch
      %142 = sbr.rel (%p140) target = $region61
    $region60: #{tpu_custom_call.1} parent=1 // pred_region
      %v143 = vld [vmem:[#allocation2] sm:$0xff]
      %v144 = vld [vmem:[#allocation2 + $0x8] sm:$0xff]
      %v145 = vld [vmem:[#allocation2 + $0x10] sm:$0xff]
      %v146 = vld [vmem:[#allocation2 + $0x18] sm:$0xff]
      %v147 = vld [vmem:[#allocation2 + $0x20] sm:$0xff]
      %v148 = vld [vmem:[#allocation2 + $0x28] sm:$0xff]
      %v149 = vld [vmem:[#allocation2 + $0x30] sm:$0xff]
      %v150 = vld [vmem:[#allocation2 + $0x38] sm:$0xff]
      %v151 = vld [vmem:[#allocation2 + $0x40] sm:$0xff]
      %v152 = vld [vmem:[#allocation2 + $0x48] sm:$0xff]
      %v153 = vld [vmem:[#allocation2 + $0x50] sm:$0xff]
      %v154 = vld [vmem:[#allocation2 + $0x58] sm:$0xff]
      %v155 = vld [vmem:[#allocation2 + $0x60] sm:$0xff]
      %v156 = vld [vmem:[#allocation2 + $0x68] sm:$0xff]
      %v157 = vld [vmem:[#allocation2 + $0x70] sm:$0xff]
      %v158 = vld [vmem:[#allocation2 + $0x78] sm:$0xff]
      %v159 = vld [vmem:[#allocation7] sm:$0xf]
      %v160 = vld [vmem:[#allocation7 + $0x4] sm:$0xf]
      %v161 = vld [vmem:[#allocation7 + $0x8] sm:$0xf]
      %v162 = vld [vmem:[#allocation7 + $0xc] sm:$0xf]
      %v163 = vld [vmem:[#allocation7 + $0x10] sm:$0xf]
      %v164 = vld [vmem:[#allocation7 + $0x14] sm:$0xf]
      %v165 = vld [vmem:[#allocation7 + $0x18] sm:$0xf]
      %v166 = vld [vmem:[#allocation7 + $0x1c] sm:$0xf]
      %v167 = vld [vmem:[#allocation7 + $0x20] sm:$0xf]
      %v168 = vld [vmem:[#allocation7 + $0x24] sm:$0xf]
      %v169 = vld [vmem:[#allocation7 + $0x28] sm:$0xf]
      %v170 = vld [vmem:[#allocation7 + $0x2c] sm:$0xf]
      %v171 = vld [vmem:[#allocation7 + $0x30] sm:$0xf]
      %v172 = vld [vmem:[#allocation7 + $0x34] sm:$0xf]
      %v173 = vld [vmem:[#allocation7 + $0x38] sm:$0xf]
      %v174 = vld [vmem:[#allocation7 + $0x3c] sm:$0xf]
      %v175 = vld [vmem:[#allocation10] sm:$0xf]
      %v176 = vld [vmem:[#allocation10 + $0x4] sm:$0xf]
      %v177 = vld [vmem:[#allocation10 + $0x8] sm:$0xf]
      %v178 = vld [vmem:[#allocation10 + $0xc] sm:$0xf]
      %v179 = vld [vmem:[#allocation10 + $0x10] sm:$0xf]
      %v180 = vld [vmem:[#allocation10 + $0x14] sm:$0xf]
      %v181 = vld [vmem:[#allocation10 + $0x18] sm:$0xf]
      %v182 = vld [vmem:[#allocation10 + $0x1c] sm:$0xf]
      %v183 = vld [vmem:[#allocation10 + $0x20] sm:$0xf]
      %v184 = vld [vmem:[#allocation10 + $0x24] sm:$0xf]
      %v185 = vld [vmem:[#allocation10 + $0x28] sm:$0xf]
      %v186 = vld [vmem:[#allocation10 + $0x2c] sm:$0xf]
      %v187 = vld [vmem:[#allocation10 + $0x30] sm:$0xf]
      %v188 = vld [vmem:[#allocation10 + $0x34] sm:$0xf]
      %v189 = vld [vmem:[#allocation10 + $0x38] sm:$0xf]
      %v190 = vld [vmem:[#allocation10 + $0x3c] sm:$0xf]
      %v207 = vunpack.c.l.b16 %v159
      %v208 = vunpack.c.l.b16 %v160
      %v209 = vunpack.c.l.b16 %v161
      %v210 = vunpack.c.l.b16 %v162
      %v211 = vunpack.c.l.b16 %v163
      %v212 = vunpack.c.l.b16 %v164
      %v213 = vunpack.c.l.b16 %v165
      %v214 = vunpack.c.l.b16 %v166
      %v215 = vunpack.c.l.b16 %v167
      %v216 = vunpack.c.l.b16 %v168
      %v217 = vunpack.c.l.b16 %v169
      %v218 = vunpack.c.l.b16 %v170
      %v219 = vunpack.c.l.b16 %v171
      %v220 = vunpack.c.l.b16 %v172
      %v221 = vunpack.c.l.b16 %v173
      %v222 = vunpack.c.l.b16 %v174
      %v223 = vpack.c.b16 %v208, %v207
      %v224 = vpack.c.b16 %v210, %v209
      %v225 = vpack.c.b16 %v212, %v211
      %v226 = vpack.c.b16 %v214, %v213
      %v227 = vpack.c.b16 %v216, %v215
      %v228 = vpack.c.b16 %v218, %v217
      %v229 = vpack.c.b16 %v220, %v219
      %v230 = vpack.c.b16 %v222, %v221
      %v255 = vunpack.c.l.b16 %v175
      %v256 = vunpack.c.l.b16 %v176
      %v257 = vunpack.c.l.b16 %v177
      %v258 = vunpack.c.l.b16 %v178
      %v259 = vunpack.c.l.b16 %v179
      %v260 = vunpack.c.l.b16 %v180
      %v261 = vunpack.c.l.b16 %v181
      %v262 = vunpack.c.l.b16 %v182
      %v263 = vunpack.c.l.b16 %v183
      %v264 = vunpack.c.l.b16 %v184
      %v265 = vunpack.c.l.b16 %v185
      %v266 = vunpack.c.l.b16 %v186
      %v267 = vunpack.c.l.b16 %v187
      %v268 = vunpack.c.l.b16 %v188
      %v269 = vunpack.c.l.b16 %v189
      %v270 = vunpack.c.l.b16 %v190
      %v271 = vpack.c.b16 %v256, %v255
      %v272 = vpack.c.b16 %v258, %v257
      %v273 = vpack.c.b16 %v260, %v259
      %v274 = vpack.c.b16 %v262, %v261
      %v275 = vpack.c.b16 %v264, %v263
      %v276 = vpack.c.b16 %v266, %v265
      %v277 = vpack.c.b16 %v268, %v267
      %v278 = vpack.c.b16 %v270, %v269
      %287 = vmatprep.subr.bf16.mxu0 0
      %288 = vmatpush1.bf16.msra.mxu0 %v278
      %289 = vmatprep.subr.bf16.mxu0 0
      %290 = vmatpush1.bf16.msra.mxu0 %v277
      %291 = vmatprep.subr.bf16.mxu0 0
      %292 = vmatpush1.bf16.msra.mxu0 %v276
      %293 = vmatprep.subr.bf16.mxu0 0
      %294 = vmatpush1.bf16.msra.mxu0 %v275
      %295 = vmatprep.subr.bf16.mxu0 0
      %296 = vmatpush1.bf16.msra.mxu0 %v274
      %297 = vmatprep.subr.bf16.mxu0 0
      %298 = vmatpush1.bf16.msra.mxu0 %v273
      %299 = vmatprep.subr.bf16.mxu0 0
      %300 = vmatpush1.bf16.msra.mxu0 %v272
      %301 = vmatprep.subr.bf16.mxu0 0
      %302 = vmatpush1.bf16.msra.mxu0 %v271
      %303 = vmatprep.subr.bf16.mxu0 0
      %304 = vmatpush2.bf16.msra.mxu0 0
      %305 = vmatprep.subr.bf16.mxu0 0
      %306 = vmatpush2.bf16.msra.mxu0 0
      %307 = vmatprep.subr.bf16.mxu0 0
      %308 = vmatpush2.bf16.msra.mxu0 0
      %309 = vmatprep.subr.bf16.mxu0 0
      %310 = vmatpush2.bf16.msra.mxu0 0
      %311 = vmatprep.subr.bf16.mxu0 0
      %312 = vmatpush2.bf16.msra.mxu0 0
      %313 = vmatprep.subr.bf16.mxu0 0
      %314 = vmatpush2.bf16.msra.mxu0 0
      %315 = vmatprep.subr.bf16.mxu0 0
      %316 = vmatpush2.bf16.msra.mxu0 0
      %317 = vmatprep.subr.bf16.mxu0 0
      %318 = vmatpush2.bf16.msra.mxu0 0
      %319 = vmatprep.mubr.bf16.mxu0 0
      %320 = vmatmul.mubr.bf16.gmra.mxu0 %v223
      %v321 = vpop.f32.mrf.mxu0
      %v322 = vadd.f32 0.0, %v321
      %v323 = vpop.f32.mrf.mxu0
      %v324 = vpop.f32.mrf.mxu0
      %v325 = vadd.f32 0.0, %v324
      %v326 = vpop.f32.mrf.mxu0
      %327 = vmatprep.mubr.bf16.mxu0 0
      %328 = vmatmul.mubr.bf16.gmra.mxu0 %v224
      %v329 = vpop.f32.mrf.mxu0
      %v330 = vadd.f32 0.0, %v329
      %v331 = vpop.f32.mrf.mxu0
      %v332 = vpop.f32.mrf.mxu0
      %v333 = vadd.f32 0.0, %v332
      %v334 = vpop.f32.mrf.mxu0
      %335 = vmatprep.mubr.bf16.mxu0 0
      %336 = vmatmul.mubr.bf16.gmra.mxu0 %v225
      %v337 = vpop.f32.mrf.mxu0
      %v338 = vadd.f32 0.0, %v337
      %v339 = vpop.f32.mrf.mxu0
      %v340 = vpop.f32.mrf.mxu0
      %v341 = vadd.f32 0.0, %v340
      %v342 = vpop.f32.mrf.mxu0
      %343 = vmatprep.mubr.bf16.mxu0 0
      %344 = vmatmul.mubr.bf16.gmra.mxu0 %v226
      %v345 = vpop.f32.mrf.mxu0
      %v346 = vadd.f32 0.0, %v345
      %v347 = vpop.f32.mrf.mxu0
      %v348 = vpop.f32.mrf.mxu0
      %v349 = vadd.f32 0.0, %v348
      %v350 = vpop.f32.mrf.mxu0
      %351 = vmatprep.mubr.bf16.mxu0 0
      %352 = vmatmul.mubr.bf16.gmra.mxu0 %v227
      %v353 = vpop.f32.mrf.mxu0
      %v354 = vadd.f32 0.0, %v353
      %v355 = vpop.f32.mrf.mxu0
      %v356 = vpop.f32.mrf.mxu0
      %v357 = vadd.f32 0.0, %v356
      %v358 = vpop.f32.mrf.mxu0
      %359 = vmatprep.mubr.bf16.mxu0 0
      %360 = vmatmul.mubr.bf16.gmra.mxu0 %v228
      %v361 = vpop.f32.mrf.mxu0
      %v362 = vadd.f32 0.0, %v361
      %v363 = vpop.f32.mrf.mxu0
      %v364 = vpop.f32.mrf.mxu0
      %v365 = vadd.f32 0.0, %v364
      %v366 = vpop.f32.mrf.mxu0
      %367 = vmatprep.mubr.bf16.mxu0 0
      %368 = vmatmul.mubr.bf16.gmra.mxu0 %v229
      %v369 = vpop.f32.mrf.mxu0
      %v370 = vadd.f32 0.0, %v369
      %v371 = vpop.f32.mrf.mxu0
      %v372 = vpop.f32.mrf.mxu0
      %v373 = vadd.f32 0.0, %v372
      %v374 = vpop.f32.mrf.mxu0
      %375 = vmatprep.mubr.bf16.mxu0 0
      %376 = vmatmul.mubr.bf16.gmra.mxu0 %v230
      %v377 = vpop.f32.mrf.mxu0
      %v378 = vadd.f32 0.0, %v377
      %v379 = vpop.f32.mrf.mxu0
      %v380 = vpop.f32.mrf.mxu0
      %v381 = vadd.f32 0.0, %v380
      %v382 = vpop.f32.mrf.mxu0
      %383 = vdwg.mxu0
      %v384 = vadd.f32 %v143, %v322
      %v385 = vadd.f32 %v144, %v325
      %v386 = vadd.f32 %v145, %v330
      %v387 = vadd.f32 %v146, %v333
      %v388 = vadd.f32 %v147, %v338
      %v389 = vadd.f32 %v148, %v341
      %v390 = vadd.f32 %v149, %v346
      %v391 = vadd.f32 %v150, %v349
      %v392 = vadd.f32 %v151, %v354
      %v393 = vadd.f32 %v152, %v357
      %v394 = vadd.f32 %v153, %v362
      %v395 = vadd.f32 %v154, %v365
      %v396 = vadd.f32 %v155, %v370
      %v397 = vadd.f32 %v156, %v373
      %v398 = vadd.f32 %v157, %v378
      %v399 = vadd.f32 %v158, %v381
      %400 = vst [vmem:[#allocation2] sm:$0xff] %v384
      %401 = vst [vmem:[#allocation2 + $0x8] sm:$0xff] %v385
      %402 = vst [vmem:[#allocation2 + $0x10] sm:$0xff] %v386
      %403 = vst [vmem:[#allocation2 + $0x18] sm:$0xff] %v387
      %404 = vst [vmem:[#allocation2 + $0x20] sm:$0xff] %v388
      %405 = vst [vmem:[#allocation2 + $0x28] sm:$0xff] %v389
      %406 = vst [vmem:[#allocation2 + $0x30] sm:$0xff] %v390
      %407 = vst [vmem:[#allocation2 + $0x38] sm:$0xff] %v391
      %408 = vst [vmem:[#allocation2 + $0x40] sm:$0xff] %v392
      %409 = vst [vmem:[#allocation2 + $0x48] sm:$0xff] %v393
      %410 = vst [vmem:[#allocation2 + $0x50] sm:$0xff] %v394
      %411 = vst [vmem:[#allocation2 + $0x58] sm:$0xff] %v395
      %412 = vst [vmem:[#allocation2 + $0x60] sm:$0xff] %v396
      %413 = vst [vmem:[#allocation2 + $0x68] sm:$0xff] %v397
      %414 = vst [vmem:[#allocation2 + $0x70] sm:$0xff] %v398
      %415 = vst [vmem:[#allocation2 + $0x78] sm:$0xff] %v399
    $region61: #{tpu_custom_call.1} parent=1 // pred_fallthru
      _
    // Predicated region
    $region62: #{tpu_custom_call.1} parent=1 // pred_check
      %p416 = pneg %p118
    $region63: #{tpu_custom_call.1} parent=1 // pred_check_branch
      %418 = sbr.rel (%p416) target = $region65
    $region64: #{tpu_custom_call.1} parent=1 // pred_region
      %s419 = sld [smem:[#allocation6]]
      %s420 = sadd.f32 %s419, 1.0
      %v421 = vld [vmem:[#allocation2] sm:$0xff]
      %v422 = vld [vmem:[#allocation2 + $0x8] sm:$0xff]
      %v423 = vld [vmem:[#allocation2 + $0x10] sm:$0xff]
      %v424 = vld [vmem:[#allocation2 + $0x18] sm:$0xff]
      %v425 = vld [vmem:[#allocation2 + $0x20] sm:$0xff]
      %v426 = vld [vmem:[#allocation2 + $0x28] sm:$0xff]
      %v427 = vld [vmem:[#allocation2 + $0x30] sm:$0xff]
      %v428 = vld [vmem:[#allocation2 + $0x38] sm:$0xff]
      %v429 = vld [vmem:[#allocation2 + $0x40] sm:$0xff]
      %v430 = vld [vmem:[#allocation2 + $0x48] sm:$0xff]
      %v431 = vld [vmem:[#allocation2 + $0x50] sm:$0xff]
      %v432 = vld [vmem:[#allocation2 + $0x58] sm:$0xff]
      %v433 = vld [vmem:[#allocation2 + $0x60] sm:$0xff]
      %v434 = vld [vmem:[#allocation2 + $0x68] sm:$0xff]
      %v435 = vld [vmem:[#allocation2 + $0x70] sm:$0xff]
      %v436 = vld [vmem:[#allocation2 + $0x78] sm:$0xff]
      %v437 = vld [vmem:[#allocation12] sm:$0xff]
      %v438 = vld [vmem:[#allocation12 + $0x8] sm:$0xff]
      %v439 = vld [vmem:[#allocation12 + $0x10] sm:$0xff]
      %v440 = vld [vmem:[#allocation12 + $0x18] sm:$0xff]
      %v441 = vld [vmem:[#allocation12 + $0x20] sm:$0xff]
      %v442 = vld [vmem:[#allocation12 + $0x28] sm:$0xff]
      %v443 = vld [vmem:[#allocation12 + $0x30] sm:$0xff]
      %v444 = vld [vmem:[#allocation12 + $0x38] sm:$0xff]
      %v445 = vld [vmem:[#allocation12 + $0x40] sm:$0xff]
      %v446 = vld [vmem:[#allocation12 + $0x48] sm:$0xff]
      %v447 = vld [vmem:[#allocation12 + $0x50] sm:$0xff]
      %v448 = vld [vmem:[#allocation12 + $0x58] sm:$0xff]
      %v449 = vld [vmem:[#allocation12 + $0x60] sm:$0xff]
      %v450 = vld [vmem:[#allocation12 + $0x68] sm:$0xff]
      %v451 = vld [vmem:[#allocation12 + $0x70] sm:$0xff]
      %v452 = vld [vmem:[#allocation12 + $0x78] sm:$0xff]
      %v453 = vstv %s420
      %v454 = vmul.f32 %v453, %v437
      %v455 = vmul.f32 %v453, %v438
      %v456 = vmul.f32 %v453, %v439
      %v457 = vmul.f32 %v453, %v440
      %v458 = vmul.f32 %v453, %v441
      %v459 = vmul.f32 %v453, %v442
      %v460 = vmul.f32 %v453, %v443
      %v461 = vmul.f32 %v453, %v444
      %v462 = vmul.f32 %v453, %v445
      %v463 = vmul.f32 %v453, %v446
      %v464 = vmul.f32 %v453, %v447
      %v465 = vmul.f32 %v453, %v448
      %v466 = vmul.f32 %v453, %v449
      %v467 = vmul.f32 %v453, %v450
      %v468 = vmul.f32 %v453, %v451
      %v469 = vmul.f32 %v453, %v452
      %v470 = vadd.f32 %v421, %v454
      %v471 = vadd.f32 %v422, %v455
      %v472 = vadd.f32 %v423, %v456
      %v473 = vadd.f32 %v424, %v457
      %v474 = vadd.f32 %v425, %v458
      %v475 = vadd.f32 %v426, %v459
      %v476 = vadd.f32 %v427, %v460
      %v477 = vadd.f32 %v428, %v461
      %v478 = vadd.f32 %v429, %v462
      %v479 = vadd.f32 %v430, %v463
      %v480 = vadd.f32 %v431, %v464
      %v481 = vadd.f32 %v432, %v465
      %v482 = vadd.f32 %v433, %v466
      %v483 = vadd.f32 %v434, %v467
      %v484 = vadd.f32 %v435, %v468
      %v485 = vadd.f32 %v436, %v469
      %486 = vst [vmem:[#allocation2] sm:$0xff] %v470
      %487 = vst [vmem:[#allocation2 + $0x8] sm:$0xff] %v471
      %488 = vst [vmem:[#allocation2 + $0x10] sm:$0xff] %v472
      %489 = vst [vmem:[#allocation2 + $0x18] sm:$0xff] %v473
      %490 = vst [vmem:[#allocation2 + $0x20] sm:$0xff] %v474
      %491 = vst [vmem:[#allocation2 + $0x28] sm:$0xff] %v475
      %492 = vst [vmem:[#allocation2 + $0x30] sm:$0xff] %v476
      %493 = vst [vmem:[#allocation2 + $0x38] sm:$0xff] %v477
      %494 = vst [vmem:[#allocation2 + $0x40] sm:$0xff] %v478
      %495 = vst [vmem:[#allocation2 + $0x48] sm:$0xff] %v479
      %496 = vst [vmem:[#allocation2 + $0x50] sm:$0xff] %v480
      %497 = vst [vmem:[#allocation2 + $0x58] sm:$0xff] %v481
      %498 = vst [vmem:[#allocation2 + $0x60] sm:$0xff] %v482
      %499 = vst [vmem:[#allocation2 + $0x68] sm:$0xff] %v483
      %500 = vst [vmem:[#allocation2 + $0x70] sm:$0xff] %v484
      %501 = vst [vmem:[#allocation2 + $0x78] sm:$0xff] %v485
      %v502 = vld [vmem:[#allocation2] sm:$0xff]
      %v503 = vld [vmem:[#allocation2 + $0x8] sm:$0xff]
      %v504 = vld [vmem:[#allocation2 + $0x10] sm:$0xff]
      %v505 = vld [vmem:[#allocation2 + $0x18] sm:$0xff]
      %v506 = vld [vmem:[#allocation2 + $0x20] sm:$0xff]
      %v507 = vld [vmem:[#allocation2 + $0x28] sm:$0xff]
      %v508 = vld [vmem:[#allocation2 + $0x30] sm:$0xff]
      %v509 = vld [vmem:[#allocation2 + $0x38] sm:$0xff]
      %v510 = vld [vmem:[#allocation2 + $0x40] sm:$0xff]
      %v511 = vld [vmem:[#allocation2 + $0x48] sm:$0xff]
      %v512 = vld [vmem:[#allocation2 + $0x50] sm:$0xff]
      %v513 = vld [vmem:[#allocation2 + $0x58] sm:$0xff]
      %v514 = vld [vmem:[#allocation2 + $0x60] sm:$0xff]
      %v515 = vld [vmem:[#allocation2 + $0x68] sm:$0xff]
      %v516 = vld [vmem:[#allocation2 + $0x70] sm:$0xff]
      %v517 = vld [vmem:[#allocation2 + $0x78] sm:$0xff]
      %v518 = vpack.c.bf16 %v503, %v502
      %v519 = vpack.c.bf16 %v505, %v504
      %v520 = vpack.c.bf16 %v507, %v506
      %v521 = vpack.c.bf16 %v509, %v508
      %v522 = vpack.c.bf16 %v511, %v510
      %v523 = vpack.c.bf16 %v513, %v512
      %v524 = vpack.c.bf16 %v515, %v514
      %v525 = vpack.c.bf16 %v517, %v516
      %v526 = vld [vmem:[#allocation13] sm:$0xf]
      %v527 = vld [vmem:[#allocation13 + $0x4] sm:$0xf]
      %v528 = vld [vmem:[#allocation13 + $0x8] sm:$0xf]
      %v529 = vld [vmem:[#allocation13 + $0xc] sm:$0xf]
      %v530 = vld [vmem:[#allocation13 + $0x10] sm:$0xf]
      %v531 = vld [vmem:[#allocation13 + $0x14] sm:$0xf]
      %v532 = vld [vmem:[#allocation13 + $0x18] sm:$0xf]
      %v533 = vld [vmem:[#allocation13 + $0x1c] sm:$0xf]
      %v534 = vld [vmem:[#allocation13 + $0x20] sm:$0xf]
      %v535 = vld [vmem:[#allocation13 + $0x24] sm:$0xf]
      %v536 = vld [vmem:[#allocation13 + $0x28] sm:$0xf]
      %v537 = vld [vmem:[#allocation13 + $0x2c] sm:$0xf]
      %v538 = vld [vmem:[#allocation13 + $0x30] sm:$0xf]
      %v539 = vld [vmem:[#allocation13 + $0x34] sm:$0xf]
      %v540 = vld [vmem:[#allocation13 + $0x38] sm:$0xf]
      %v541 = vld [vmem:[#allocation13 + $0x3c] sm:$0xf]
      %v542 = vld [vmem:[%s7] sm:$0x1]
      %v544 = vlaneseq
      %v545 = vshrl.u32 %v544, 7
      %v546 = vsub.s32 0, %v545
      %v547 = vrot.slane %v542, %v546
      %v565 = vunpack.c.l.b16 %v526
      %v566 = vunpack.c.l.b16 %v527
      %v567 = vunpack.c.l.b16 %v528
      %v568 = vunpack.c.l.b16 %v529
      %v569 = vunpack.c.l.b16 %v530
      %v570 = vunpack.c.l.b16 %v531
      %v571 = vunpack.c.l.b16 %v532
      %v572 = vunpack.c.l.b16 %v533
      %v573 = vunpack.c.l.b16 %v534
      %v574 = vunpack.c.l.b16 %v535
      %v575 = vunpack.c.l.b16 %v536
      %v576 = vunpack.c.l.b16 %v537
      %v577 = vunpack.c.l.b16 %v538
      %v578 = vunpack.c.l.b16 %v539
      %v579 = vunpack.c.l.b16 %v540
      %v580 = vunpack.c.l.b16 %v541
      %v581 = vpack.c.b16 %v566, %v565
      %v582 = vpack.c.b16 %v568, %v567
      %v583 = vpack.c.b16 %v570, %v569
      %v584 = vpack.c.b16 %v572, %v571
      %v585 = vpack.c.b16 %v574, %v573
      %v586 = vpack.c.b16 %v576, %v575
      %v587 = vpack.c.b16 %v578, %v577
      %v588 = vpack.c.b16 %v580, %v579
      %597 = vmatprep.subr.bf16.mxu0 0
      %598 = vmatpush1.bf16.msra.mxu0 %v588
      %599 = vmatprep.subr.bf16.mxu0 0
      %600 = vmatpush1.bf16.msra.mxu0 %v587
      %601 = vmatprep.subr.bf16.mxu0 0
      %602 = vmatpush1.bf16.msra.mxu0 %v586
      %603 = vmatprep.subr.bf16.mxu0 0
      %604 = vmatpush1.bf16.msra.mxu0 %v585
      %605 = vmatprep.subr.bf16.mxu0 0
      %606 = vmatpush1.bf16.msra.mxu0 %v584
      %607 = vmatprep.subr.bf16.mxu0 0
      %608 = vmatpush1.bf16.msra.mxu0 %v583
      %609 = vmatprep.subr.bf16.mxu0 0
      %610 = vmatpush1.bf16.msra.mxu0 %v582
      %611 = vmatprep.subr.bf16.mxu0 0
      %612 = vmatpush1.bf16.msra.mxu0 %v581
      %613 = vmatprep.subr.bf16.mxu0 0
      %614 = vmatpush2.bf16.msra.mxu0 0
      %615 = vmatprep.subr.bf16.mxu0 0
      %616 = vmatpush2.bf16.msra.mxu0 0
      %617 = vmatprep.subr.bf16.mxu0 0
      %618 = vmatpush2.bf16.msra.mxu0 0
      %619 = vmatprep.subr.bf16.mxu0 0
      %620 = vmatpush2.bf16.msra.mxu0 0
      %621 = vmatprep.subr.bf16.mxu0 0
      %622 = vmatpush2.bf16.msra.mxu0 0
      %623 = vmatprep.subr.bf16.mxu0 0
      %624 = vmatpush2.bf16.msra.mxu0 0
      %625 = vmatprep.subr.bf16.mxu0 0
      %626 = vmatpush2.bf16.msra.mxu0 0
      %627 = vmatprep.subr.bf16.mxu0 0
      %628 = vmatpush2.bf16.msra.mxu0 0
      %629 = vmatprep.mubr.bf16.mxu0 0
      %630 = vmatmul.mubr.bf16.gmra.mxu0 %v518
      %v631 = vpop.f32.mrf.mxu0
      %v632 = vadd.f32 %v547, %v631
      %v633 = vpop.f32.mrf.mxu0
      %v634 = vpop.f32.mrf.mxu0
      %v635 = vadd.f32 %v547, %v634
      %v636 = vpop.f32.mrf.mxu0
      %637 = vmatprep.mubr.bf16.mxu0 0
      %638 = vmatmul.mubr.bf16.gmra.mxu0 %v519
      %v639 = vpop.f32.mrf.mxu0
      %v640 = vadd.f32 %v547, %v639
      %v641 = vpop.f32.mrf.mxu0
      %v642 = vpop.f32.mrf.mxu0
      %v643 = vadd.f32 %v547, %v642
      %v644 = vpop.f32.mrf.mxu0
      %645 = vmatprep.mubr.bf16.mxu0 0
      %646 = vmatmul.mubr.bf16.gmra.mxu0 %v520
      %v647 = vpop.f32.mrf.mxu0
      %v648 = vadd.f32 %v547, %v647
      %v649 = vpop.f32.mrf.mxu0
      %v650 = vpop.f32.mrf.mxu0
      %v651 = vadd.f32 %v547, %v650
      %v652 = vpop.f32.mrf.mxu0
      %653 = vmatprep.mubr.bf16.mxu0 0
      %654 = vmatmul.mubr.bf16.gmra.mxu0 %v521
      %v655 = vpop.f32.mrf.mxu0
      %v656 = vadd.f32 %v547, %v655
      %v657 = vpop.f32.mrf.mxu0
      %v658 = vpop.f32.mrf.mxu0
      %v659 = vadd.f32 %v547, %v658
      %v660 = vpop.f32.mrf.mxu0
      %661 = vmatprep.mubr.bf16.mxu0 0
      %662 = vmatmul.mubr.bf16.gmra.mxu0 %v522
      %v663 = vpop.f32.mrf.mxu0
      %v664 = vadd.f32 %v547, %v663
      %v665 = vpop.f32.mrf.mxu0
      %v666 = vpop.f32.mrf.mxu0
      %v667 = vadd.f32 %v547, %v666
      %v668 = vpop.f32.mrf.mxu0
      %669 = vmatprep.mubr.bf16.mxu0 0
      %670 = vmatmul.mubr.bf16.gmra.mxu0 %v523
      %v671 = vpop.f32.mrf.mxu0
      %v672 = vadd.f32 %v547, %v671
      %v673 = vpop.f32.mrf.mxu0
      %v674 = vpop.f32.mrf.mxu0
      %v675 = vadd.f32 %v547, %v674
      %v676 = vpop.f32.mrf.mxu0
      %677 = vmatprep.mubr.bf16.mxu0 0
      %678 = vmatmul.mubr.bf16.gmra.mxu0 %v524
      %v679 = vpop.f32.mrf.mxu0
      %v680 = vadd.f32 %v547, %v679
      %v681 = vpop.f32.mrf.mxu0
      %v682 = vpop.f32.mrf.mxu0
      %v683 = vadd.f32 %v547, %v682
      %v684 = vpop.f32.mrf.mxu0
      %685 = vmatprep.mubr.bf16.mxu0 0
      %686 = vmatmul.mubr.bf16.gmra.mxu0 %v525
      %v687 = vpop.f32.mrf.mxu0
      %v688 = vadd.f32 %v547, %v687
      %v689 = vpop.f32.mrf.mxu0
      %v690 = vpop.f32.mrf.mxu0
      %v691 = vadd.f32 %v547, %v690
      %v692 = vpop.f32.mrf.mxu0
      %693 = vdwg.mxu0
      %v694 = vmax.f32 %v632, 0.0
      %v695 = vmax.f32 %v635, 0.0
      %v696 = vmax.f32 %v640, 0.0
      %v697 = vmax.f32 %v643, 0.0
      %v698 = vmax.f32 %v648, 0.0
      %v699 = vmax.f32 %v651, 0.0
      %v700 = vmax.f32 %v656, 0.0
      %v701 = vmax.f32 %v659, 0.0
      %v702 = vmax.f32 %v664, 0.0
      %v703 = vmax.f32 %v667, 0.0
      %v704 = vmax.f32 %v672, 0.0
      %v705 = vmax.f32 %v675, 0.0
      %v706 = vmax.f32 %v680, 0.0
      %v707 = vmax.f32 %v683, 0.0
      %v708 = vmax.f32 %v688, 0.0
      %v709 = vmax.f32 %v691, 0.0
      %v710 = vpack.c.bf16 %v695, %v694
      %v711 = vpack.c.bf16 %v697, %v696
      %v712 = vpack.c.bf16 %v699, %v698
      %v713 = vpack.c.bf16 %v701, %v700
      %v714 = vpack.c.bf16 %v703, %v702
      %v715 = vpack.c.bf16 %v705, %v704
      %v716 = vpack.c.bf16 %v707, %v706
      %v717 = vpack.c.bf16 %v709, %v708
      %v718 = vld [vmem:[#allocation15] sm:$0xf]
      %v719 = vld [vmem:[#allocation15 + $0x4] sm:$0xf]
      %v720 = vld [vmem:[#allocation15 + $0x8] sm:$0xf]
      %v721 = vld [vmem:[#allocation15 + $0xc] sm:$0xf]
      %v722 = vld [vmem:[#allocation15 + $0x10] sm:$0xf]
      %v723 = vld [vmem:[#allocation15 + $0x14] sm:$0xf]
      %v724 = vld [vmem:[#allocation15 + $0x18] sm:$0xf]
      %v725 = vld [vmem:[#allocation15 + $0x1c] sm:$0xf]
      %v726 = vld [vmem:[#allocation15 + $0x20] sm:$0xf]
      %v727 = vld [vmem:[#allocation15 + $0x24] sm:$0xf]
      %v728 = vld [vmem:[#allocation15 + $0x28] sm:$0xf]
      %v729 = vld [vmem:[#allocation15 + $0x2c] sm:$0xf]
      %v730 = vld [vmem:[#allocation15 + $0x30] sm:$0xf]
      %v731 = vld [vmem:[#allocation15 + $0x34] sm:$0xf]
      %v732 = vld [vmem:[#allocation15 + $0x38] sm:$0xf]
      %v733 = vld [vmem:[#allocation15 + $0x3c] sm:$0xf]
      %v734 = vld [vmem:[%s9] sm:$0x1]
      %v736 = vlaneseq
      %v737 = vshrl.u32 %v736, 7
      %v738 = vsub.s32 0, %v737
      %v739 = vrot.slane %v734, %v738
      %v757 = vunpack.c.l.b16 %v718
      %v758 = vunpack.c.l.b16 %v719
      %v759 = vunpack.c.l.b16 %v720
      %v760 = vunpack.c.l.b16 %v721
      %v761 = vunpack.c.l.b16 %v722
      %v762 = vunpack.c.l.b16 %v723
      %v763 = vunpack.c.l.b16 %v724
      %v764 = vunpack.c.l.b16 %v725
      %v765 = vunpack.c.l.b16 %v726
      %v766 = vunpack.c.l.b16 %v727
      %v767 = vunpack.c.l.b16 %v728
      %v768 = vunpack.c.l.b16 %v729
      %v769 = vunpack.c.l.b16 %v730
      %v770 = vunpack.c.l.b16 %v731
      %v771 = vunpack.c.l.b16 %v732
      %v772 = vunpack.c.l.b16 %v733
      %v773 = vpack.c.b16 %v758, %v757
      %v774 = vpack.c.b16 %v760, %v759
      %v775 = vpack.c.b16 %v762, %v761
      %v776 = vpack.c.b16 %v764, %v763
      %v777 = vpack.c.b16 %v766, %v765
      %v778 = vpack.c.b16 %v768, %v767
      %v779 = vpack.c.b16 %v770, %v769
      %v780 = vpack.c.b16 %v772, %v771
      %789 = vmatprep.subr.bf16.mxu0 0
      %790 = vmatpush1.bf16.msra.mxu0 %v780
      %791 = vmatprep.subr.bf16.mxu0 0
      %792 = vmatpush1.bf16.msra.mxu0 %v779
      %793 = vmatprep.subr.bf16.mxu0 0
      %794 = vmatpush1.bf16.msra.mxu0 %v778
      %795 = vmatprep.subr.bf16.mxu0 0
      %796 = vmatpush1.bf16.msra.mxu0 %v777
      %797 = vmatprep.subr.bf16.mxu0 0
      %798 = vmatpush1.bf16.msra.mxu0 %v776
      %799 = vmatprep.subr.bf16.mxu0 0
      %800 = vmatpush1.bf16.msra.mxu0 %v775
      %801 = vmatprep.subr.bf16.mxu0 0
      %802 = vmatpush1.bf16.msra.mxu0 %v774
      %803 = vmatprep.subr.bf16.mxu0 0
      %804 = vmatpush1.bf16.msra.mxu0 %v773
      %805 = vmatprep.subr.bf16.mxu0 0
      %806 = vmatpush2.bf16.msra.mxu0 0
      %807 = vmatprep.subr.bf16.mxu0 0
      %808 = vmatpush2.bf16.msra.mxu0 0
      %809 = vmatprep.subr.bf16.mxu0 0
      %810 = vmatpush2.bf16.msra.mxu0 0
      %811 = vmatprep.subr.bf16.mxu0 0
      %812 = vmatpush2.bf16.msra.mxu0 0
      %813 = vmatprep.subr.bf16.mxu0 0
      %814 = vmatpush2.bf16.msra.mxu0 0
      %815 = vmatprep.subr.bf16.mxu0 0
      %816 = vmatpush2.bf16.msra.mxu0 0
      %817 = vmatprep.subr.bf16.mxu0 0
      %818 = vmatpush2.bf16.msra.mxu0 0
      %819 = vmatprep.subr.bf16.mxu0 0
      %820 = vmatpush2.bf16.msra.mxu0 0
      %821 = vmatprep.mubr.bf16.mxu0 0
      %822 = vmatmul.mubr.bf16.gmra.mxu0 %v710
      %v823 = vpop.f32.mrf.mxu0
      %v824 = vadd.f32 %v739, %v823
      %v825 = vpop.f32.mrf.mxu0
      %v826 = vpop.f32.mrf.mxu0
      %v827 = vadd.f32 %v739, %v826
      %v828 = vpop.f32.mrf.mxu0
      %829 = vmatprep.mubr.bf16.mxu0 0
      %830 = vmatmul.mubr.bf16.gmra.mxu0 %v711
      %v831 = vpop.f32.mrf.mxu0
      %v832 = vadd.f32 %v739, %v831
      %v833 = vpop.f32.mrf.mxu0
      %v834 = vpop.f32.mrf.mxu0
      %v835 = vadd.f32 %v739, %v834
      %v836 = vpop.f32.mrf.mxu0
      %837 = vmatprep.mubr.bf16.mxu0 0
      %838 = vmatmul.mubr.bf16.gmra.mxu0 %v712
      %v839 = vpop.f32.mrf.mxu0
      %v840 = vadd.f32 %v739, %v839
      %v841 = vpop.f32.mrf.mxu0
      %v842 = vpop.f32.mrf.mxu0
      %v843 = vadd.f32 %v739, %v842
      %v844 = vpop.f32.mrf.mxu0
      %845 = vmatprep.mubr.bf16.mxu0 0
      %846 = vmatmul.mubr.bf16.gmra.mxu0 %v713
      %v847 = vpop.f32.mrf.mxu0
      %v848 = vadd.f32 %v739, %v847
      %v849 = vpop.f32.mrf.mxu0
      %v850 = vpop.f32.mrf.mxu0
      %v851 = vadd.f32 %v739, %v850
      %v852 = vpop.f32.mrf.mxu0
      %853 = vmatprep.mubr.bf16.mxu0 0
      %854 = vmatmul.mubr.bf16.gmra.mxu0 %v714
      %v855 = vpop.f32.mrf.mxu0
      %v856 = vadd.f32 %v739, %v855
      %v857 = vpop.f32.mrf.mxu0
      %v858 = vpop.f32.mrf.mxu0
      %v859 = vadd.f32 %v739, %v858
      %v860 = vpop.f32.mrf.mxu0
      %861 = vmatprep.mubr.bf16.mxu0 0
      %862 = vmatmul.mubr.bf16.gmra.mxu0 %v715
      %v863 = vpop.f32.mrf.mxu0
      %v864 = vadd.f32 %v739, %v863
      %v865 = vpop.f32.mrf.mxu0
      %v866 = vpop.f32.mrf.mxu0
      %v867 = vadd.f32 %v739, %v866
      %v868 = vpop.f32.mrf.mxu0
      %869 = vmatprep.mubr.bf16.mxu0 0
      %870 = vmatmul.mubr.bf16.gmra.mxu0 %v716
      %v871 = vpop.f32.mrf.mxu0
      %v872 = vadd.f32 %v739, %v871
      %v873 = vpop.f32.mrf.mxu0
      %v874 = vpop.f32.mrf.mxu0
      %v875 = vadd.f32 %v739, %v874
      %v876 = vpop.f32.mrf.mxu0
      %877 = vmatprep.mubr.bf16.mxu0 0
      %878 = vmatmul.mubr.bf16.gmra.mxu0 %v717
      %v879 = vpop.f32.mrf.mxu0
      %v880 = vadd.f32 %v739, %v879
      %v881 = vpop.f32.mrf.mxu0
      %v882 = vpop.f32.mrf.mxu0
      %v883 = vadd.f32 %v739, %v882
      %v884 = vpop.f32.mrf.mxu0
      %885 = vdwg.mxu0
      %886 = vst [vmem:[#allocation16] sm:$0xff] %v824
      %887 = vst [vmem:[#allocation16 + $0x8] sm:$0xff] %v827
      %888 = vst [vmem:[#allocation16 + $0x10] sm:$0xff] %v832
      %889 = vst [vmem:[#allocation16 + $0x18] sm:$0xff] %v835
      %890 = vst [vmem:[#allocation16 + $0x20] sm:$0xff] %v840
      %891 = vst [vmem:[#allocation16 + $0x28] sm:$0xff] %v843
      %892 = vst [vmem:[#allocation16 + $0x30] sm:$0xff] %v848
      %893 = vst [vmem:[#allocation16 + $0x38] sm:$0xff] %v851
      %894 = vst [vmem:[#allocation16 + $0x40] sm:$0xff] %v856
      %895 = vst [vmem:[#allocation16 + $0x48] sm:$0xff] %v859
      %896 = vst [vmem:[#allocation16 + $0x50] sm:$0xff] %v864
      %897 = vst [vmem:[#allocation16 + $0x58] sm:$0xff] %v867
      %898 = vst [vmem:[#allocation16 + $0x60] sm:$0xff] %v872
      %899 = vst [vmem:[#allocation16 + $0x68] sm:$0xff] %v875
      %900 = vst [vmem:[#allocation16 + $0x70] sm:$0xff] %v880
      %901 = vst [vmem:[#allocation16 + $0x78] sm:$0xff] %v883
    $region65: #{tpu_custom_call.1} parent=1 // pred_fallthru
      _
    // Predicated region
    $region66: #{tpu_custom_call.1} parent=1 // pred_check
      _
    $region67: #{tpu_custom_call.1} parent=1 // pred_check_branch
      %903 = sbr.rel (0) target = $region69
    $region68: #{tpu_custom_call.1} parent=1 // pred_region
      %s905 = ssub.s32 2048, 2048
      %906 = vsyncadd [#allocation9], %s905
      %s907 = sshll.u32 [#allocation16], 4
      %s908 = int_to_ptr.vmem [resolvable:$true] %s907
      %913 = dma.vmem_to_hbm [thread:$0]  %s908, 2048, %s10, [#allocation9], 128, 128, 8
    $region69: #{tpu_custom_call.1} parent=1 // pred_fallthru
      _
    // Predicated region
    $region70: #{tpu_custom_call.1} parent=1 // pred_check
      _
    $region71: #{tpu_custom_call.1} parent=1 // pred_check_branch
      %915 = sbr.rel (0) target = $region73
    $region72: #{tpu_custom_call.1} parent=1 // pred_region
      %916 = dma.done [#allocation9], 2048
    $region73: #{tpu_custom_call.1} parent=1 // pred_fallthru
      _
    %917 = vsyncpa [#allocation8], 1
    %918 = vsyncpa [#allocation11], 1
    %919 = vsyncpa [#allocation14], 1
    %920 = vsyncpa [#allocation9], 1

</llo_original>
